<compile_context>
chip_gen: v5e
topology: v5e:2x2
jax: 0.10.0
libtpu: 0.0.40
codegen_flags: <defaults>
</compile_context>

<pallas_src>
import jax
import jax.numpy as jnp
from jax.experimental import pallas as pl
from jax.experimental.pallas import tpu as pltpu


# ---------------------------------------------------------------------------
# Kernel: one tiled matmul + bias, f32 accumulation.
# ---------------------------------------------------------------------------
def wm_matmul_kernel(x_ref, w_ref, b_ref, o_ref, acc_ref):
    # x_ref  : (tm, tk) f32      input tile (cast to bf16 in VMEM)
    # w_ref  : (tk, tn) bf16     scale-folded effective weight tile
    # b_ref  : (1, tn)  f32      scale-folded effective bias tile
    # o_ref  : (tm, tn) f32      output tile
    # acc_ref: (tm, tn) f32      VMEM accumulator (resident across the K axis)
    k = pl.program_id(2)

    @pl.when(k == 0)
    def _init():
        acc_ref[...] = jnp.zeros_like(acc_ref)

    # Cast the streamed-f32 activations to the weight compute dtype on the VPU
    # (free; avoids an extra HBM pass from casting in the wrapper).
    x = x_ref[...].astype(w_ref.dtype)
    acc_ref[...] += jnp.dot(x, w_ref[...], preferred_element_type=jnp.float32)

    @pl.when(k == pl.num_programs(2) - 1)
    def _finalize():
        # Bias add + single lane-dense store, all in f32.
        o_ref[...] = (acc_ref[...] + b_ref[...]).astype(o_ref.dtype)


# ---------------------------------------------------------------------------
# Wrapper.
# ---------------------------------------------------------------------------
def _fold_scales(gate_weights, rand_i, keep_mask, eps, n_experts):
    """s_e = keep_e * (relu(gate_e) + eps) + [e == rand_i]  (f32, shape [E])."""
    scales = keep_mask.astype(jnp.float32) * (
        jnp.maximum(gate_weights.astype(jnp.float32), 0.0) + eps)
    scales = scales + (jnp.arange(n_experts) == rand_i).astype(jnp.float32)
    return scales


def _pick_tile(dim, cap, preferred=(512, 256, 128)):
    """Largest divisor of `dim` that is <= cap, preferring MXU-friendly sizes."""
    if dim <= cap:
        return dim
    for p in preferred:
        if p <= cap and dim % p == 0:
            return p
    t = cap
    while dim % t:
        t -= 1
    return t


def wm_forward(x, w_stack, b_stack, gate_weights, rand_i, keep_mask,
               eps=1e-6, compute_dtype=jnp.bfloat16):
    B, Din = x.shape
    E, _, Dout = w_stack.shape

    scales = _fold_scales(gate_weights, rand_i, keep_mask, eps, E)

    # Fold the per-expert scales all the way into the parameters (f32 math,
    # single cast to bf16): out = x @ w_eff + b_eff.
    w_eff = jnp.einsum("e,eio->io", scales, w_stack.astype(jnp.float32),
                       precision=jax.lax.Precision.HIGHEST)
    w_eff = w_eff.astype(compute_dtype)                       # [Din, Dout] bf16
    b_eff = jnp.einsum("e,eo->o", scales,
                       b_stack.reshape(E, Dout).astype(jnp.float32))
    b_eff = b_eff.reshape(1, Dout)                             # [1, Dout] f32

    # Tile selection (caps chosen so double-buffered bf16 tiles + f32 acc stay
    # under ~4 MiB — safe for the 16 MiB v5e scoped default and v7x's 64 MiB
    # physical VMEM; tn/tk prefer 512/256/128 so production sizes keep the
    # 256x256 (v6e/v7x) / 128x128 (v5e) MXU fed).
    tm = _pick_tile(B, 256)
    tn = _pick_tile(Dout, 512)
    tk = _pick_tile(Din, 512)
    grid = (B // tm, Dout // tn, Din // tk)

    return pl.pallas_call(
        wm_matmul_kernel,
        out_shape=jax.ShapeDtypeStruct((B, Dout), x.dtype),
        grid=grid,
        in_specs=[
            pl.BlockSpec((tm, tk), lambda i, j, k: (i, k)),   # x (f32)
            pl.BlockSpec((tk, tn), lambda i, j, k: (k, j)),   # w_eff (bf16)
            pl.BlockSpec((1, tn), lambda i, j, k: (0, j)),    # b_eff (f32)
        ],
        out_specs=pl.BlockSpec((tm, tn), lambda i, j, k: (i, j)),
        scratch_shapes=[pltpu.VMEM((tm, tn), jnp.float32)],
        compiler_params=pltpu.CompilerParams(
            # M and N parallel (shard across v7x's 2 TCs), K reduction last.
            dimension_semantics=("parallel", "parallel", "arbitrary"),
            vmem_limit_bytes=32 * 1024 * 1024),
    )(x, w_eff, b_eff)


def wm_reference(x, w_stack, b_stack, gate_weights, rand_i, keep_mask, eps=1e-6):
    """Pure-JAX reference mirroring the PyTorch forward (per-expert loop)."""
    logits_all = jnp.einsum("bi,eio->ebo", x, w_stack,
                            precision=jax.lax.Precision.HIGHEST) + b_stack
    out = logits_all[rand_i]
    scale = keep_mask * (jnp.maximum(gate_weights, 0.0) + eps)
    out = out + jnp.einsum("e,ebo->bo", scale, logits_all,
                           precision=jax.lax.Precision.HIGHEST)
    return out


if __name__ == "__main__":
    B, IN, OUT, E = 8, 32, 32, 4
    RHO, EPS = 1.0, 1e-6

    key = jax.random.PRNGKey(0)
    k_x, k_w, k_b, k_i, k_keep = jax.random.split(key, 5)

    x = jax.random.normal(k_x, (B, IN), dtype=jnp.float32)

    # nn.Linear-style deterministic init: U(-1/sqrt(in), 1/sqrt(in)).
    bound = 1.0 / jnp.sqrt(jnp.float32(IN))
    w_stack = jax.random.uniform(k_w, (E, IN, OUT), minval=-bound, maxval=bound,
                                 dtype=jnp.float32)
    b_stack = jax.random.uniform(k_b, (E, 1, OUT), minval=-bound, maxval=bound,
                                 dtype=jnp.float32)
    gate_weights = jnp.ones((E,), dtype=jnp.float32)  # nn.Parameter(torch.ones(E))

    # TODO(synk): the module's random.randint / per-expert torch.rand(1) gate
    # are host RNG; here they are deterministic jax.random draws passed in.
    rand_i = jax.random.randint(k_i, (), 0, E)
    keep_mask = (jax.random.uniform(k_keep, (E,)) <= RHO).astype(jnp.float32)

    out = wm_forward(x, w_stack, b_stack, gate_weights, rand_i, keep_mask, EPS)
    out = jax.block_until_ready(out)
    assert out.shape == (B, OUT)

    # (1) tight check vs a reference fed the same bf16-rounded operands
    #     (kernel = bf16 MXU inputs, scales folded into weights in f32 first,
    #      f32 accumulation + f32 bias add).
    scales = _fold_scales(gate_weights, rand_i, keep_mask, EPS, E)
    w_eff_f32 = jnp.einsum("e,eio->io", scales, w_stack,
                           precision=jax.lax.Precision.HIGHEST)
    b_eff = jnp.einsum("e,eo->o", scales, b_stack.reshape(E, OUT)).reshape(1, OUT)
    x_m = x.astype(jnp.bfloat16).astype(jnp.float32)
    w_m = w_eff_f32.astype(jnp.bfloat16).astype(jnp.float32)
    ref_matched = jnp.dot(x_m, w_m, precision=jax.lax.Precision.HIGHEST) + b_eff
    assert jnp.allclose(out, ref_matched, atol=1e-4, rtol=1e-4)

    # (2) semantic check vs the full-f32 per-expert reference
    #     (bf16-streaming tolerance).
    ref_f32 = wm_reference(x, w_stack, b_stack, gate_weights, rand_i, keep_mask, EPS)
    assert jnp.allclose(out, ref_f32, atol=5e-2, rtol=5e-2)

    print("KERNEL_OK")
</pallas_src>

<mosaic_0001>
module attributes {stable_mosaic.version = 11 : i64} {
  func.func @wm_matmul_kernel(%arg0: i32, %arg1: i32, %arg2: i32, %arg3: memref<8x32xf32, #tpu.memory_space<vmem>>, %arg4: memref<32x32xbf16, #tpu.memory_space<vmem>>, %arg5: memref<1x32xf32, #tpu.memory_space<vmem>>, %arg6: memref<8x32xf32, #tpu.memory_space<vmem>>, %arg7: memref<8x32xf32, #tpu.memory_space<vmem>>) attributes {dimension_semantics = [#tpu.dimension_semantics<parallel>, #tpu.dimension_semantics<parallel>, #tpu.dimension_semantics<arbitrary>], iteration_bounds = array<i64: 1, 1, 1>, scalar_prefetch = 0 : i64, scratch_operands = 1 : i64, tpu.core_type = #tpu.core_type<tc>, window_params = [{transform_indices = @transform_0, window_bounds = array<i64: 8, 32>}, {transform_indices = @transform_1, window_bounds = array<i64: 32, 32>}, {transform_indices = @transform_2, window_bounds = array<i64: 1, 32>}, {transform_indices = @transform_3, window_bounds = array<i64: 8, 32>}]} {
    %c0_i32 = arith.constant 0 : i32
    %0 = arith.cmpi eq, %arg2, %c0_i32 : i32
    %1 = arith.extui %0 : i1 to i32
    %c0_i32_0 = arith.constant 0 : i32
    %2 = arith.cmpi ne, %1, %c0_i32_0 : i32
    scf.if %2 {
      %cst_10 = arith.constant 0.000000e+00 : f32
      %13 = vector.broadcast %cst_10 : f32 to vector<8x32xf32>
      %c0_11 = arith.constant 0 : index
      %c0_12 = arith.constant 0 : index
      %14 = vector.load %arg7[%c0_11, %c0_12] : memref<8x32xf32, #tpu.memory_space<vmem>>, vector<8x32xf32>
      tpu.vector_store %arg7[%c0_11, %c0_12], %13 {strides = array<i32>} : memref<8x32xf32, #tpu.memory_space<vmem>>, vector<8x32xf32>,
    } else {
    }
    %c0 = arith.constant 0 : index
    %c0_1 = arith.constant 0 : index
    %3 = vector.load %arg3[%c0, %c0_1] : memref<8x32xf32, #tpu.memory_space<vmem>>, vector<8x32xf32>
    %4 = arith.truncf %3 : vector<8x32xf32> to vector<8x32xbf16>
    %c0_2 = arith.constant 0 : index
    %c0_3 = arith.constant 0 : index
    %5 = vector.load %arg7[%c0_2, %c0_3] : memref<8x32xf32, #tpu.memory_space<vmem>>, vector<8x32xf32>
    %c0_4 = arith.constant 0 : index
    %c0_5 = arith.constant 0 : index
    %6 = vector.load %arg4[%c0_4, %c0_5] : memref<32x32xbf16, #tpu.memory_space<vmem>>, vector<32x32xbf16>
    %cst = arith.constant dense<0.000000e+00> : vector<8x32xf32>
    %7 = tpu.matmul %4, %6, %cst {dimension_numbers = #tpu.dot_dimension_numbers<[1], [0], [0], [1], [0, 0, 1, 1], [], []>} : vector<8x32xbf16>, vector<32x32xbf16>, vector<8x32xf32> -> vector<8x32xf32>
    %8 = arith.addf %5, %7 : vector<8x32xf32>
    %c0_6 = arith.constant 0 : index
    %c0_7 = arith.constant 0 : index
    %9 = vector.load %arg7[%c0_6, %c0_7] : memref<8x32xf32, #tpu.memory_space<vmem>>, vector<8x32xf32>
    tpu.vector_store %arg7[%c0_6, %c0_7], %8 {strides = array<i32>} : memref<8x32xf32, #tpu.memory_space<vmem>>, vector<8x32xf32>,
    %c0_i32_8 = arith.constant 0 : i32
    %10 = arith.cmpi eq, %arg2, %c0_i32_8 : i32
    %11 = arith.extui %10 : i1 to i32
    %c0_i32_9 = arith.constant 0 : i32
    %12 = arith.cmpi ne, %11, %c0_i32_9 : i32
    scf.if %12 {
      %c0_10 = arith.constant 0 : index
      %c0_11 = arith.constant 0 : index
      %13 = vector.load %arg7[%c0_10, %c0_11] : memref<8x32xf32, #tpu.memory_space<vmem>>, vector<8x32xf32>
      %c0_12 = arith.constant 0 : index
      %c0_13 = arith.constant 0 : index
      %14 = vector.load %arg5[%c0_12, %c0_13] : memref<1x32xf32, #tpu.memory_space<vmem>>, vector<1x32xf32>
      %15 = vector.broadcast %14 : vector<1x32xf32> to vector<8x32xf32>
      %16 = arith.addf %13, %15 : vector<8x32xf32>
      %c0_14 = arith.constant 0 : index
      %c0_15 = arith.constant 0 : index
      %17 = vector.load %arg6[%c0_14, %c0_15] : memref<8x32xf32, #tpu.memory_space<vmem>>, vector<8x32xf32>
      tpu.vector_store %arg6[%c0_14, %c0_15], %16 {strides = array<i32>} : memref<8x32xf32, #tpu.memory_space<vmem>>, vector<8x32xf32>,
    } else {
    }
    return
  }
  func.func @transform_0(%arg0: i32, %arg1: i32, %arg2: i32) -> (i32, i32) {
    %c0_i32 = arith.constant 0 : i32
    return %arg0, %arg2 : i32, i32
  }
  func.func @transform_1(%arg0: i32, %arg1: i32, %arg2: i32) -> (i32, i32) {
    %c0_i32 = arith.constant 0 : i32
    return %arg2, %arg1 : i32, i32
  }
  func.func @transform_2(%arg0: i32, %arg1: i32, %arg2: i32) -> (i32, i32) {
    %c0_i32 = arith.constant 0 : i32
    %c0_i32_0 = arith.constant 0 : i32
    return %c0_i32, %arg1 : i32, i32
  }
  func.func @transform_3(%arg0: i32, %arg1: i32, %arg2: i32) -> (i32, i32) {
    %c0_i32 = arith.constant 0 : i32
    return %arg0, %arg1 : i32, i32
  }
}

</mosaic_0001>

<llo_original>
// kernel: tpu_custom_call.1
$region0: #{tpu_custom_call.1}
  #allocation0 [shape = 'u32[]', space=smem, size = 0x4, offset = 0x4, fixed_abs, tag = 'smem constant byte address 0x4 - core index']
  #allocation1 [shape = 'u32[72,128]{1,0:T(1,128)}', space=vmem, size = 0x9000, scoped, tag = 'internal scratch']
  #allocation2 [shape = 'f32[8,32]{1,0:T(8,128)}', space=vmem, size = 0x1000, scoped, tag = 'scratch operand']
  %s0 = inlined_call_operand.hbm [shape: f32[8,32], index: 0, kind: input, shape index: {}]
  %s1 = inlined_call_operand.hbm [shape: bf16[32,32], index: 1, kind: input, shape index: {}]
  %s2 = inlined_call_operand.vmem [shape: f32[1,32], index: 2, kind: input, shape index: {}]
  %s3 = inlined_call_operand.hbm [shape: f32[8,32], index: 3, kind: output, shape index: {}]
  %s4 = sld [smem:[#allocation0]]
  $region38: #{tpu_custom_call.1} parent=0
    _
  %s6 = ssub.s32 1, %s4
  %s7 = scalar_select 0, %s6, %s4
  $region1: #{tpu_custom_call.1} parent=0
    #allocation3 [shape = 'u8[4096]{0}', space=vmem, size = 0x1000, scoped, tag = 'input window, operand 0, single buffered']
    #allocation4 [shape = 's32[1]{0}', space=sflag, size = 0x4, scoped, tag = 'scoped memory for tpu_custom_call.1']
    #allocation5 [shape = 's32[1]{0}', space=sflag, size = 0x4, scoped, tag = 'scoped memory for tpu_custom_call.1']
    #allocation6 [shape = 'u8[8192]{0}', space=vmem, size = 0x2000, scoped, tag = 'input window, operand 1, single buffered']
    #allocation7 [shape = 's32[1]{0}', space=sflag, size = 0x4, scoped, tag = 'scoped memory for tpu_custom_call.1']
    #allocation8 [shape = 'u8[4096]{0}', space=vmem, size = 0x1000, scoped, tag = 'output window, operand 0, single buffered']
    %8 = vsyncpa [#allocation4], 0
    %9 = vsyncpa [#allocation7], 0
    %10 = vsyncpa [#allocation5], 0
    // Predicated region
    $region2: #{tpu_custom_call.1} parent=1 // pred_check
      _
    $region3: #{tpu_custom_call.1} parent=1 // pred_check_branch
      %12 = sbr.rel (0) target = $region5
    $region4: #{tpu_custom_call.1} parent=1 // pred_region
      %14 = vsyncadd [#allocation4], 0
      %s16 = sshll.u32 %s0, 4
      %s17 = int_to_ptr.hbm [resolvable:$true] %s16
      %s18 = sshll.u32 [#allocation3], 4
      %s19 = int_to_ptr.vmem [resolvable:$true] %s18
      %21 = dma.hbm_to_vmem [thread:$0]  %s17, 128, %s19, [#allocation4]
    $region5: #{tpu_custom_call.1} parent=1 // pred_fallthru
      _
    // Predicated region
    $region6: #{tpu_custom_call.1} parent=1 // pred_check
      _
    $region7: #{tpu_custom_call.1} parent=1 // pred_check_branch
      %23 = sbr.rel (0) target = $region9
    $region8: #{tpu_custom_call.1} parent=1 // pred_region
      %25 = vsyncadd [#allocation7], 0
      %s26 = sshll.u32 %s1, 4
      %s27 = int_to_ptr.hbm [resolvable:$true] %s26
      %s28 = sshll.u32 [#allocation6], 4
      %s29 = int_to_ptr.vmem [resolvable:$true] %s28
      %34 = dma.hbm_to_vmem [thread:$0]  %s27, 256, %s29, [#allocation7], 64, 64, 4
    $region9: #{tpu_custom_call.1} parent=1 // pred_fallthru
      _
    // Predicated region
    $region10: #{tpu_custom_call.1} parent=1 // pred_check
      _
    $region11: #{tpu_custom_call.1} parent=1 // pred_check_branch
      %36 = sbr.rel (0) target = $region13
    $region12: #{tpu_custom_call.1} parent=1 // pred_region
      _
    $region13: #{tpu_custom_call.1} parent=1 // pred_fallthru
      _
    // Predicated region
    $region14: #{tpu_custom_call.1} parent=1 // pred_check
      _
    $region15: #{tpu_custom_call.1} parent=1 // pred_check_branch
      %38 = sbr.rel (0) target = $region17
    $region16: #{tpu_custom_call.1} parent=1 // pred_region
      %40 = dma.done [#allocation4], 128
    $region17: #{tpu_custom_call.1} parent=1 // pred_fallthru
      _
    // Predicated region
    $region18: #{tpu_custom_call.1} parent=1 // pred_check
      _
    $region19: #{tpu_custom_call.1} parent=1 // pred_check_branch
      %42 = sbr.rel (0) target = $region21
    $region20: #{tpu_custom_call.1} parent=1 // pred_region
      %44 = dma.done [#allocation7], 256
    $region21: #{tpu_custom_call.1} parent=1 // pred_fallthru
      _
    %p46 = scmp.eq.s32.totalorder 0, 0
    // Predicated region
    $region22: #{tpu_custom_call.1} parent=1 // pred_check
      %p47 = pneg %p46
    $region23: #{tpu_custom_call.1} parent=1 // pred_check_branch
      %49 = sbr.rel (%p47) target = $region25
    $region24: #{tpu_custom_call.1} parent=1 // pred_region
      %vm50 = vcmask 261120
      %51 = vst.msk [vmem:[#allocation2] sm:$0xff] %vm50, 0.0
    $region25: #{tpu_custom_call.1} parent=1 // pred_fallthru
      _
    %v52 = vld [vmem:[#allocation3] sm:$0xff]
    %v53 = vpack.c.bf16 %v52, %v52
    %v54 = vld [vmem:[#allocation2] sm:$0xff]
    %v55 = vld [vmem:[#allocation6] sm:$0xf]
    %v56 = vld [vmem:[#allocation6 + $0x4] sm:$0xf]
    %v57 = vld [vmem:[#allocation6 + $0x8] sm:$0xf]
    %v58 = vld [vmem:[#allocation6 + $0xc] sm:$0xf]
    %v63 = vunpack.c.l.b16 %v55
    %v64 = vunpack.c.l.b16 %v56
    %v65 = vunpack.c.l.b16 %v57
    %v66 = vunpack.c.l.b16 %v58
    %v67 = vpack.c.b16 %v64, %v63
    %v68 = vpack.c.b16 %v66, %v65
    %vm71 = vcmask 261120
    %v73 = vsel %vm71, %v53, 0
    %75 = vmatpush.bf16.msra.mxu0 0
    %76 = vmatpush.bf16.msra.mxu0 0
    %77 = vmatpush.bf16.msra.mxu0 0
    %78 = vmatpush.bf16.msra.mxu0 0
    %79 = vmatpush.bf16.msra.mxu0 0
    %80 = vmatpush.bf16.msra.mxu0 0
    %81 = vmatpush.bf16.msra.mxu0 %v68
    %82 = vmatpush.bf16.msra.mxu0 %v67
    %83 = vmatmul.bf16.gmra.mxu0 %v73
    %v84 = vpop.f32.mrf.mxu0
    %v85 = vadd.f32 0.0, %v84
    %v86 = vpop.f32.mrf.mxu0
    %87 = vdwg.mxu0
    %v88 = vadd.f32 %v54, %v85
    %89 = vst.msk [vmem:[#allocation2] sm:$0xff] %vm71, %v88
    // Predicated region
    $region26: #{tpu_custom_call.1} parent=1 // pred_check
      %p90 = pneg %p46
    $region27: #{tpu_custom_call.1} parent=1 // pred_check_branch
      %92 = sbr.rel (%p90) target = $region29
    $region28: #{tpu_custom_call.1} parent=1 // pred_region
      %v93 = vld [vmem:[#allocation2] sm:$0xff]
      %v94 = vld [vmem:[%s2] sm:$0x1]
      %v96 = vperm.slane %v94, 0
      %v98 = vadd.f32 %v93, %v96
      %99 = vst.msk [vmem:[#allocation8] sm:$0xff] %vm71, %v98
    $region29: #{tpu_custom_call.1} parent=1 // pred_fallthru
      _
    // Predicated region
    $region30: #{tpu_custom_call.1} parent=1 // pred_check
      _
    $region31: #{tpu_custom_call.1} parent=1 // pred_check_branch
      %101 = sbr.rel (0) target = $region33
    $region32: #{tpu_custom_call.1} parent=1 // pred_region
      %103 = vsyncadd [#allocation5], 0
      %s105 = sshll.u32 [#allocation8], 4
      %s106 = int_to_ptr.vmem [resolvable:$true] %s105
      %s107 = sshll.u32 %s3, 4
      %s108 = int_to_ptr.hbm [resolvable:$true] %s107
      %110 = dma.vmem_to_hbm [thread:$0]  %s106, 128, %s108, [#allocation5]
    $region33: #{tpu_custom_call.1} parent=1 // pred_fallthru
      _
    // Predicated region
    $region34: #{tpu_custom_call.1} parent=1 // pred_check
      _
    $region35: #{tpu_custom_call.1} parent=1 // pred_check_branch
      %112 = sbr.rel (0) target = $region37
    $region36: #{tpu_custom_call.1} parent=1 // pred_region
      %114 = dma.done [#allocation5], 128
    $region37: #{tpu_custom_call.1} parent=1 // pred_fallthru
      _
    %115 = vsyncpa [#allocation4], 1
    %116 = vsyncpa [#allocation7], 1
    %117 = vsyncpa [#allocation5], 1

</llo_original>
